<compile_context>
chip_gen: v5e
topology: v5e:2x2
jax: 0.10.0
libtpu: 0.0.40
codegen_flags: <defaults>
</compile_context>

<pallas_src>
import functools

import jax
import jax.numpy as jnp
from jax.experimental import pallas as pl
from jax.experimental.pallas import tpu as pltpu


def _round_up(v, m):
    return -(-v // m) * m


def _leaky_relu(v, slope=0.3):
    # The reference module uses nn.LeakyReLU(0.3).
    return jnp.where(v > 0, v, slope * v)


def _decoder_logsig_kernel(x_ref, w1, w2, w3, wf1, wf2, wf3, w_head, out_ref,
                           *, N, SEG):
    f32 = jnp.float32

    def mm(v, w_r):
        w = w_r[...]
        # bf16 (or f32) MXU operands, f32 accumulate. Biases are folded into the
        # weights via the constant-1 channel carried through every layer.
        return jnp.dot(v.astype(w.dtype), w, preferred_element_type=f32)

    # --- decoder trunk (LeakyReLU 0.3) ---
    h = _leaky_relu(mm(x_ref[...], w1))
    h = _leaky_relu(mm(h, w2))
    o = mm(h, w3)                                   # hidden_to_out (no activation)

    # --- log-signature head MLP (ReLU) ---
    h = jnp.maximum(mm(o, wf1), 0.0)
    h = jnp.maximum(mm(h, wf2), 0.0)
    h3 = jnp.maximum(mm(h, wf3), 0.0)               # [TB, N*10 + 1] (const channel last)

    # --- single fused head matmul (path + prefix-rep + step-rep segments) ---
    # lanes [0, SEG)                 : flattened generated path [(N+1)*C], zero-padded
    # lanes [SEG*(1+k), +SEG) k<N    : prefix_k[i] replicated over j, at offset PW+i*C+j
    # lanes [SEG*(1+N+k), +SEG) k<N  : delta_k[j] replicated over i, at offset PW+i*C+j
    head = mm(h3, w_head)                           # [TB, (1+2N)*SEG]

    # out = path (lanes [0,PW)) + m (lanes [PW,PW+MW)), everything else zero.
    # All slices are SEG(=128·k)-aligned -> no relayouts; one unmasked wide store.
    acc = head[:, :SEG]
    for k in range(N):                              # statically unrolled (N small)
        o1 = SEG * (1 + k)
        o2 = SEG * (1 + N + k)
        acc = acc + head[:, o1:o1 + SEG] * head[:, o2:o2 + SEG]
    out_ref[...] = acc


def make_params(key, latent_dim, hidden_dim, output_dim, condition_dim, N, d):
    """Deterministic synthetic parameters (PyTorch-like uniform init), raw shapes."""
    in_dim = latent_dim + condition_dim
    spec = [
        ('w_lh', (in_dim, hidden_dim)), ('b_lh', (hidden_dim,)),
        ('w_hh', (hidden_dim, hidden_dim)), ('b_hh', (hidden_dim,)),
        ('w_ho', (hidden_dim, output_dim)), ('b_ho', (output_dim,)),
        ('wf1', (output_dim, hidden_dim)), ('bf1', (hidden_dim,)),
        ('wf2', (hidden_dim, hidden_dim)), ('bf2', (hidden_dim,)),
        ('wf3', (hidden_dim, N * 10)), ('bf3', (N * 10,)),
        ('wf4', (10, d)), ('bf4', (d,)),
    ]
    params = {}
    fan_in = in_dim
    for i, (name, shape) in enumerate(spec):
        if name.startswith('w'):
            fan_in = shape[0]
        bound = 1.0 / (fan_in ** 0.5)
        params[name] = jax.random.uniform(
            jax.random.fold_in(key, i), shape, jnp.float32, -bound, bound)
    return params


def decoder_logsignature_forward(x, params, *, N, d, order=2,
                                 batch_tile=None,
                                 matmul_dtype=jnp.bfloat16):
    if order != 2:
        # TODO(synk): only depth-2 log-signature is implemented.
        raise NotImplementedError("only order == 2 log-signature is implemented")
    f32 = jnp.float32
    B = x.shape[0]
    C = d + 1
    P = N * 10
    PW = (N + 1) * C                 # flattened path width
    MW = C * C                       # flattened raw second-moment width
    SEG = _round_up(PW + MW, 128)    # lane-aligned per-step segment / output width
    p = params

    # ------- static fused weights (tiny, built once in plain JAX) -------
    # A[m, n] = 1 iff m < n : cumsum-with-leading-zero as a matrix.
    A = (jnp.arange(N)[:, None] < jnp.arange(N + 1)[None, :]).astype(f32)   # [N, N+1]
    w4pad = jnp.pad(p['wf4'].astype(f32), ((0, 0), (1, 0)))                 # [10, C]
    w_path3 = (A[:, None, :, None] * w4pad[None, :, None, :]).reshape(P, N + 1, C)
    base = jnp.concatenate([jnp.full((1,), 1.0 / N, f32), p['bf4'].astype(f32)])
    b_path3 = jnp.arange(N + 1, dtype=f32)[:, None] * base[None, :]         # [N+1, C]

    w_pre3, b_pre3 = w_path3[:, :N, :], b_path3[:N, :]                      # prefix rows
    w_step3 = (jnp.eye(N, dtype=f32)[:, None, :, None]
               * w4pad[None, :, None, :]).reshape(P, N, C)                  # per-step inc
    b_step3 = jnp.broadcast_to(base[None, :], (N, C))

    # Segment 0: flattened path at lanes [0, PW), zero-padded to SEG.
    path_blk = jnp.concatenate([w_path3.reshape(P, PW), b_path3.reshape(1, PW)], 0)
    seg_path = jnp.pad(path_blk, ((0, 0), (0, SEG - PW)))                   # [P+1, SEG]

    # Segments 1..N: prefix_k[i] replicated over j; segments N+1..2N: delta_k[j]
    # replicated over i.  Placed at lanes [PW, PW+MW) of each SEG-wide segment so
    # the unrolled in-kernel sum lands m[i,j] directly next to the path lanes.
    pre_rep = jnp.concatenate(
        [jnp.broadcast_to(w_pre3[:, :, :, None], (P, N, C, C)).reshape(P, N, MW),
         jnp.broadcast_to(b_pre3[None, :, :, None], (1, N, C, C)).reshape(1, N, MW)], 0)
    stp_rep = jnp.concatenate(
        [jnp.broadcast_to(w_step3[:, :, None, :], (P, N, C, C)).reshape(P, N, MW),
         jnp.broadcast_to(b_step3[None, :, None, :], (1, N, C, C)).reshape(1, N, MW)], 0)

    def _to_segs(blk):               # [P+1, N, MW] -> [P+1, N*SEG]
        return jnp.pad(blk, ((0, 0), (0, 0),
                             (PW, SEG - PW - MW))).reshape(P + 1, N * SEG)

    w_head = jnp.concatenate([seg_path, _to_segs(pre_rep), _to_segs(stp_rep)], axis=1)

    # ------- biases folded into weights via a constant-1 channel -------
    def aug(wname, bname):
        w = p[wname].astype(f32)
        b = p[bname].astype(f32)
        wb = jnp.concatenate([w, b[None, :]], axis=0)                        # [in+1, out]
        col = jnp.zeros((wb.shape[0], 1), f32).at[-1, 0].set(1.0)            # carry the 1
        return jnp.concatenate([wb, col], axis=1)                            # [in+1, out+1]

    weights = [aug('w_lh', 'b_lh'), aug('w_hh', 'b_hh'), aug('w_ho', 'b_ho'),
               aug('wf1', 'bf1'), aug('wf2', 'bf2'), aug('wf3', 'bf3'), w_head]
    weights = [w.astype(matmul_dtype) for w in weights]

    # ------- batch tiling (weights VMEM-resident via constant index_maps) -------
    if batch_tile is None:
        if B <= 8:
            batch_tile = 8
        else:
            # >=2 grid blocks so v7x's two TensorCores both get work under
            # dimension_semantics=("parallel",); <=256 rows per block to match
            # the 256-wide MXU M dim on v6e/v7x without oversizing VMEM.
            batch_tile = min(256, _round_up(-(-B // 2), 8))
    TB = batch_tile
    n_blocks = -(-B // TB)
    B_pad = n_blocks * TB

    x_aug = jnp.concatenate([x.astype(f32), jnp.ones((B, 1), f32)], axis=1)
    if B_pad != B:
        x_aug = jnp.pad(x_aug, ((0, B_pad - B), (0, 0)))
    in_aug = x_aug.shape[1]

    def _const_spec(a):
        return pl.BlockSpec(a.shape, lambda i, _nd=a.ndim: (0,) * _nd)

    kernel = functools.partial(_decoder_logsig_kernel, N=N, SEG=SEG)
    out = pl.pallas_call(
        kernel,
        out_shape=jax.ShapeDtypeStruct((B_pad, SEG), f32),
        grid=(n_blocks,),
        in_specs=[pl.BlockSpec((TB, in_aug), lambda i: (i, 0))]
                 + [_const_spec(w) for w in weights],
        out_specs=pl.BlockSpec((TB, SEG), lambda i: (i, 0)),
        compiler_params=pltpu.CompilerParams(
            dimension_semantics=("parallel",)),   # v7x: shard batch over both TCs
    )(x_aug, *weights)

    # ------- plain-JAX glue: unpack packed output, antisymmetrize Levy area -------
    out = out[:B]
    path = out[:, :PW].reshape(B, N + 1, C)
    m = out[:, PW:PW + MW].reshape(B, C, C)        # m[i,j] = sum_k prefix_k,i * delta_k,j
    area = 0.5 * (m - jnp.swapaxes(m, 1, 2))
    iu, ju = jnp.triu_indices(C, k=1)
    # depth-2 log-signature: level-1 channels then Lyndon words (i<j), lexicographic
    sig = jnp.concatenate([path[:, -1, :], area[:, iu, ju]], axis=-1)
    return path, sig


def _reference(x, p, N, d):
    """Pure-JAX reference of the same forward pass (for correctness check)."""
    def leaky(v):
        return jnp.where(v > 0, v, 0.3 * v)
    h = leaky(x @ p['w_lh'] + p['b_lh'])
    h = leaky(h @ p['w_hh'] + p['b_hh'])
    o = h @ p['w_ho'] + p['b_ho']
    h = jax.nn.relu(o @ p['wf1'] + p['bf1'])
    h = jax.nn.relu(h @ p['wf2'] + p['bf2'])
    h = jax.nn.relu(h @ p['wf3'] + p['bf3'])
    B = x.shape[0]
    y = h.reshape(B, N, 10) @ p['wf4'] + p['bf4']
    y = jnp.cumsum(y, axis=1)
    y = jnp.concatenate([jnp.zeros((B, 1, d), jnp.float32), y], axis=1)
    t = jnp.broadcast_to(jnp.linspace(0.0, 1.0, N + 1)[None, :, None],
                         (B, N + 1, 1))
    path = jnp.concatenate([t, y], axis=-1)
    prefix = path[:, :-1, :]
    deltas = path[:, 1:, :] - path[:, :-1, :]
    m = jnp.einsum('bki,bkj->bij', prefix, deltas)
    area = 0.5 * (m - jnp.swapaxes(m, 1, 2))
    C = d + 1
    iu, ju = jnp.triu_indices(C, k=1)
    sig = jnp.concatenate([path[:, -1, :], area[:, iu, ju]], axis=-1)
    return path, sig


if __name__ == "__main__":
    latent_dim, condition_dim = 8, 4
    hidden_dim, output_dim = 32, 16
    N, d, order = 8, 4, 2
    B = 2

    key = jax.random.PRNGKey(0)
    kx, kp = jax.random.split(key)
    x = jax.random.normal(kx, (B, latent_dim + condition_dim), jnp.float32)
    params = make_params(kp, latent_dim, hidden_dim, output_dim,
                         condition_dim, N, d)

    path_ref, sig_ref = _reference(x, params, N, d)

    # Default performance path: bf16 MXU operands, f32 accumulate.
    path, sig = decoder_logsignature_forward(x, params, N=N, d=d, order=order)
    jax.block_until_ready((path, sig))
    assert path.shape == (B, N + 1, d + 1)
    assert sig.shape == (B, (d + 1) + (d + 1) * d // 2)
    assert jnp.allclose(path, path_ref, atol=0.1, rtol=0.1)
    assert jnp.allclose(sig, sig_ref, atol=0.1, rtol=0.1)

    # f32 MXU path for the tight numerical check.
    path32, sig32 = decoder_logsignature_forward(
        x, params, N=N, d=d, order=order, matmul_dtype=jnp.float32)
    jax.block_until_ready((path32, sig32))
    assert jnp.allclose(path32, path_ref, atol=1e-5, rtol=1e-5)
    assert jnp.allclose(sig32, sig_ref, atol=1e-5, rtol=1e-5)

    print("KERNEL_OK")
</pallas_src>

<mosaic_0001>
module attributes {stable_mosaic.version = 11 : i64} {
  func.func @_decoder_logsig_kernel(%arg0: i32, %arg1: memref<8x13xf32, #tpu.memory_space<vmem>>, %arg2: memref<13x33xbf16, #tpu.memory_space<vmem>>, %arg3: memref<33x33xbf16, #tpu.memory_space<vmem>>, %arg4: memref<33x17xbf16, #tpu.memory_space<vmem>>, %arg5: memref<17x33xbf16, #tpu.memory_space<vmem>>, %arg6: memref<33x33xbf16, #tpu.memory_space<vmem>>, %arg7: memref<33x81xbf16, #tpu.memory_space<vmem>>, %arg8: memref<81x2176xbf16, #tpu.memory_space<vmem>>, %arg9: memref<8x128xf32, #tpu.memory_space<vmem>>) attributes {dimension_semantics = [#tpu.dimension_semantics<parallel>], iteration_bounds = array<i64: 1>, scalar_prefetch = 0 : i64, scratch_operands = 0 : i64, tpu.core_type = #tpu.core_type<tc>, window_params = [{transform_indices = @transform_0, window_bounds = array<i64: 8, 13>}, {pipeline_mode = #tpu.pipeline_mode<synchronous>, transform_indices = @transform_1, window_bounds = array<i64: 13, 33>}, {pipeline_mode = #tpu.pipeline_mode<synchronous>, transform_indices = @transform_2, window_bounds = array<i64: 33, 33>}, {pipeline_mode = #tpu.pipeline_mode<synchronous>, transform_indices = @transform_3, window_bounds = array<i64: 33, 17>}, {pipeline_mode = #tpu.pipeline_mode<synchronous>, transform_indices = @transform_4, window_bounds = array<i64: 17, 33>}, {pipeline_mode = #tpu.pipeline_mode<synchronous>, transform_indices = @transform_5, window_bounds = array<i64: 33, 33>}, {pipeline_mode = #tpu.pipeline_mode<synchronous>, transform_indices = @transform_6, window_bounds = array<i64: 33, 81>}, {pipeline_mode = #tpu.pipeline_mode<synchronous>, transform_indices = @transform_7, window_bounds = array<i64: 81, 2176>}, {transform_indices = @transform_8, window_bounds = array<i64: 8, 128>}]} {
    %c0 = arith.constant 0 : index
    %c0_0 = arith.constant 0 : index
    %0 = vector.load %arg1[%c0, %c0_0] : memref<8x13xf32, #tpu.memory_space<vmem>>, vector<8x13xf32>
    %c0_1 = arith.constant 0 : index
    %c0_2 = arith.constant 0 : index
    %1 = vector.load %arg2[%c0_1, %c0_2] : memref<13x33xbf16, #tpu.memory_space<vmem>>, vector<13x33xbf16>
    %2 = arith.truncf %0 : vector<8x13xf32> to vector<8x13xbf16>
    %cst = arith.constant dense<0.000000e+00> : vector<8x33xf32>
    %3 = tpu.matmul %2, %1, %cst {dimension_numbers = #tpu.dot_dimension_numbers<[1], [0], [0], [1], [0, 0, 1, 1], [], []>} : vector<8x13xbf16>, vector<13x33xbf16>, vector<8x33xf32> -> vector<8x33xf32>
    %cst_3 = arith.constant 0.000000e+00 : f32
    %4 = vector.broadcast %cst_3 : f32 to vector<8x33xf32>
    %5 = arith.cmpf ogt, %3, %4 : vector<8x33xf32>
    %cst_4 = arith.constant 3.000000e-01 : f32
    %6 = vector.broadcast %cst_4 : f32 to vector<8x33xf32>
    %7 = arith.mulf %6, %3 : vector<8x33xf32>
    %8 = arith.select %5, %3, %7 : vector<8x33xi1>, vector<8x33xf32>
    %c0_5 = arith.constant 0 : index
    %c0_6 = arith.constant 0 : index
    %9 = vector.load %arg3[%c0_5, %c0_6] : memref<33x33xbf16, #tpu.memory_space<vmem>>, vector<33x33xbf16>
    %10 = arith.truncf %8 : vector<8x33xf32> to vector<8x33xbf16>
    %cst_7 = arith.constant dense<0.000000e+00> : vector<8x33xf32>
    %11 = tpu.matmul %10, %9, %cst_7 {dimension_numbers = #tpu.dot_dimension_numbers<[1], [0], [0], [1], [0, 0, 1, 1], [], []>} : vector<8x33xbf16>, vector<33x33xbf16>, vector<8x33xf32> -> vector<8x33xf32>
    %cst_8 = arith.constant 0.000000e+00 : f32
    %12 = vector.broadcast %cst_8 : f32 to vector<8x33xf32>
    %13 = arith.cmpf ogt, %11, %12 : vector<8x33xf32>
    %cst_9 = arith.constant 3.000000e-01 : f32
    %14 = vector.broadcast %cst_9 : f32 to vector<8x33xf32>
    %15 = arith.mulf %14, %11 : vector<8x33xf32>
    %16 = arith.select %13, %11, %15 : vector<8x33xi1>, vector<8x33xf32>
    %c0_10 = arith.constant 0 : index
    %c0_11 = arith.constant 0 : index
    %17 = vector.load %arg4[%c0_10, %c0_11] : memref<33x17xbf16, #tpu.memory_space<vmem>>, vector<33x17xbf16>
    %18 = arith.truncf %16 : vector<8x33xf32> to vector<8x33xbf16>
    %cst_12 = arith.constant dense<0.000000e+00> : vector<8x17xf32>
    %19 = tpu.matmul %18, %17, %cst_12 {dimension_numbers = #tpu.dot_dimension_numbers<[1], [0], [0], [1], [0, 0, 1, 1], [], []>} : vector<8x33xbf16>, vector<33x17xbf16>, vector<8x17xf32> -> vector<8x17xf32>
    %c0_13 = arith.constant 0 : index
    %c0_14 = arith.constant 0 : index
    %20 = vector.load %arg5[%c0_13, %c0_14] : memref<17x33xbf16, #tpu.memory_space<vmem>>, vector<17x33xbf16>
    %21 = arith.truncf %19 : vector<8x17xf32> to vector<8x17xbf16>
    %cst_15 = arith.constant dense<0.000000e+00> : vector<8x33xf32>
    %22 = tpu.matmul %21, %20, %cst_15 {dimension_numbers = #tpu.dot_dimension_numbers<[1], [0], [0], [1], [0, 0, 1, 1], [], []>} : vector<8x17xbf16>, vector<17x33xbf16>, vector<8x33xf32> -> vector<8x33xf32>
    %cst_16 = arith.constant 0.000000e+00 : f32
    %23 = vector.broadcast %cst_16 : f32 to vector<8x33xf32>
    %24 = arith.maximumf %22, %23 : vector<8x33xf32>
    %c0_17 = arith.constant 0 : index
    %c0_18 = arith.constant 0 : index
    %25 = vector.load %arg6[%c0_17, %c0_18] : memref<33x33xbf16, #tpu.memory_space<vmem>>, vector<33x33xbf16>
    %26 = arith.truncf %24 : vector<8x33xf32> to vector<8x33xbf16>
    %cst_19 = arith.constant dense<0.000000e+00> : vector<8x33xf32>
    %27 = tpu.matmul %26, %25, %cst_19 {dimension_numbers = #tpu.dot_dimension_numbers<[1], [0], [0], [1], [0, 0, 1, 1], [], []>} : vector<8x33xbf16>, vector<33x33xbf16>, vector<8x33xf32> -> vector<8x33xf32>
    %cst_20 = arith.constant 0.000000e+00 : f32
    %28 = vector.broadcast %cst_20 : f32 to vector<8x33xf32>
    %29 = arith.maximumf %27, %28 : vector<8x33xf32>
    %c0_21 = arith.constant 0 : index
    %c0_22 = arith.constant 0 : index
    %30 = vector.load %arg7[%c0_21, %c0_22] : memref<33x81xbf16, #tpu.memory_space<vmem>>, vector<33x81xbf16>
    %31 = arith.truncf %29 : vector<8x33xf32> to vector<8x33xbf16>
    %cst_23 = arith.constant dense<0.000000e+00> : vector<8x81xf32>
    %32 = tpu.matmul %31, %30, %cst_23 {dimension_numbers = #tpu.dot_dimension_numbers<[1], [0], [0], [1], [0, 0, 1, 1], [], []>} : vector<8x33xbf16>, vector<33x81xbf16>, vector<8x81xf32> -> vector<8x81xf32>
    %cst_24 = arith.constant 0.000000e+00 : f32
    %33 = vector.broadcast %cst_24 : f32 to vector<8x81xf32>
    %34 = arith.maximumf %32, %33 : vector<8x81xf32>
    %c0_25 = arith.constant 0 : index
    %c0_26 = arith.constant 0 : index
    %35 = vector.load %arg8[%c0_25, %c0_26] : memref<81x2176xbf16, #tpu.memory_space<vmem>>, vector<81x2176xbf16>
    %36 = arith.truncf %34 : vector<8x81xf32> to vector<8x81xbf16>
    %cst_27 = arith.constant dense<0.000000e+00> : vector<8x2176xf32>
    %37 = tpu.matmul %36, %35, %cst_27 {dimension_numbers = #tpu.dot_dimension_numbers<[1], [0], [0], [1], [0, 0, 1, 1], [], []>} : vector<8x81xbf16>, vector<81x2176xbf16>, vector<8x2176xf32> -> vector<8x2176xf32>
    %38 = vector.extract_strided_slice %37 {offsets = [0, 0], sizes = [8, 128], strides = [1, 1]} : vector<8x2176xf32> to vector<8x128xf32>
    %39 = vector.extract_strided_slice %37 {offsets = [0, 128], sizes = [8, 128], strides = [1, 1]} : vector<8x2176xf32> to vector<8x128xf32>
    %40 = vector.extract_strided_slice %37 {offsets = [0, 1152], sizes = [8, 128], strides = [1, 1]} : vector<8x2176xf32> to vector<8x128xf32>
    %41 = arith.mulf %39, %40 : vector<8x128xf32>
    %42 = arith.addf %38, %41 : vector<8x128xf32>
    %43 = vector.extract_strided_slice %37 {offsets = [0, 256], sizes = [8, 128], strides = [1, 1]} : vector<8x2176xf32> to vector<8x128xf32>
    %44 = vector.extract_strided_slice %37 {offsets = [0, 1280], sizes = [8, 128], strides = [1, 1]} : vector<8x2176xf32> to vector<8x128xf32>
    %45 = arith.mulf %43, %44 : vector<8x128xf32>
    %46 = arith.addf %42, %45 : vector<8x128xf32>
    %47 = vector.extract_strided_slice %37 {offsets = [0, 384], sizes = [8, 128], strides = [1, 1]} : vector<8x2176xf32> to vector<8x128xf32>
    %48 = vector.extract_strided_slice %37 {offsets = [0, 1408], sizes = [8, 128], strides = [1, 1]} : vector<8x2176xf32> to vector<8x128xf32>
    %49 = arith.mulf %47, %48 : vector<8x128xf32>
    %50 = arith.addf %46, %49 : vector<8x128xf32>
    %51 = vector.extract_strided_slice %37 {offsets = [0, 512], sizes = [8, 128], strides = [1, 1]} : vector<8x2176xf32> to vector<8x128xf32>
    %52 = vector.extract_strided_slice %37 {offsets = [0, 1536], sizes = [8, 128], strides = [1, 1]} : vector<8x2176xf32> to vector<8x128xf32>
    %53 = arith.mulf %51, %52 : vector<8x128xf32>
    %54 = arith.addf %50, %53 : vector<8x128xf32>
    %55 = vector.extract_strided_slice %37 {offsets = [0, 640], sizes = [8, 128], strides = [1, 1]} : vector<8x2176xf32> to vector<8x128xf32>
    %56 = vector.extract_strided_slice %37 {offsets = [0, 1664], sizes = [8, 128], strides = [1, 1]} : vector<8x2176xf32> to vector<8x128xf32>
    %57 = arith.mulf %55, %56 : vector<8x128xf32>
    %58 = arith.addf %54, %57 : vector<8x128xf32>
    %59 = vector.extract_strided_slice %37 {offsets = [0, 768], sizes = [8, 128], strides = [1, 1]} : vector<8x2176xf32> to vector<8x128xf32>
    %60 = vector.extract_strided_slice %37 {offsets = [0, 1792], sizes = [8, 128], strides = [1, 1]} : vector<8x2176xf32> to vector<8x128xf32>
    %61 = arith.mulf %59, %60 : vector<8x128xf32>
    %62 = arith.addf %58, %61 : vector<8x128xf32>
    %63 = vector.extract_strided_slice %37 {offsets = [0, 896], sizes = [8, 128], strides = [1, 1]} : vector<8x2176xf32> to vector<8x128xf32>
    %64 = vector.extract_strided_slice %37 {offsets = [0, 1920], sizes = [8, 128], strides = [1, 1]} : vector<8x2176xf32> to vector<8x128xf32>
    %65 = arith.mulf %63, %64 : vector<8x128xf32>
    %66 = arith.addf %62, %65 : vector<8x128xf32>
    %67 = vector.extract_strided_slice %37 {offsets = [0, 1024], sizes = [8, 128], strides = [1, 1]} : vector<8x2176xf32> to vector<8x128xf32>
    %68 = vector.extract_strided_slice %37 {offsets = [0, 2048], sizes = [8, 128], strides = [1, 1]} : vector<8x2176xf32> to vector<8x128xf32>
    %69 = arith.mulf %67, %68 : vector<8x128xf32>
    %70 = arith.addf %66, %69 : vector<8x128xf32>
    %c0_28 = arith.constant 0 : index
    %c0_29 = arith.constant 0 : index
    %71 = vector.load %arg9[%c0_28, %c0_29] : memref<8x128xf32, #tpu.memory_space<vmem>>, vector<8x128xf32>
    tpu.vector_store %arg9[%c0_28, %c0_29], %70 {strides = array<i32>} : memref<8x128xf32, #tpu.memory_space<vmem>>, vector<8x128xf32>,
    return
  }
  func.func @transform_0(%arg0: i32) -> (i32, i32) {
    %c0_i32 = arith.constant 0 : i32
    %c0_i32_0 = arith.constant 0 : i32
    return %arg0, %c0_i32 : i32, i32
  }
  func.func @transform_1(%arg0: i32) -> (i32, i32) {
    %c0_i32 = arith.constant 0 : i32
    %c0_i32_0 = arith.constant 0 : i32
    %c0_i32_1 = arith.constant 0 : i32
    return %c0_i32, %c0_i32_0 : i32, i32
  }
  func.func @transform_2(%arg0: i32) -> (i32, i32) {
    %c0_i32 = arith.constant 0 : i32
    %c0_i32_0 = arith.constant 0 : i32
    %c0_i32_1 = arith.constant 0 : i32
    return %c0_i32, %c0_i32_0 : i32, i32
  }
  func.func @transform_3(%arg0: i32) -> (i32, i32) {
    %c0_i32 = arith.constant 0 : i32
    %c0_i32_0 = arith.constant 0 : i32
    %c0_i32_1 = arith.constant 0 : i32
    return %c0_i32, %c0_i32_0 : i32, i32
  }
  func.func @transform_4(%arg0: i32) -> (i32, i32) {
    %c0_i32 = arith.constant 0 : i32
    %c0_i32_0 = arith.constant 0 : i32
    %c0_i32_1 = arith.constant 0 : i32
    return %c0_i32, %c0_i32_0 : i32, i32
  }
  func.func @transform_5(%arg0: i32) -> (i32, i32) {
    %c0_i32 = arith.constant 0 : i32
    %c0_i32_0 = arith.constant 0 : i32
    %c0_i32_1 = arith.constant 0 : i32
    return %c0_i32, %c0_i32_0 : i32, i32
  }
  func.func @transform_6(%arg0: i32) -> (i32, i32) {
    %c0_i32 = arith.constant 0 : i32
    %c0_i32_0 = arith.constant 0 : i32
    %c0_i32_1 = arith.constant 0 : i32
    return %c0_i32, %c0_i32_0 : i32, i32
  }
  func.func @transform_7(%arg0: i32) -> (i32, i32) {
    %c0_i32 = arith.constant 0 : i32
    %c0_i32_0 = arith.constant 0 : i32
    %c0_i32_1 = arith.constant 0 : i32
    return %c0_i32, %c0_i32_0 : i32, i32
  }
  func.func @transform_8(%arg0: i32) -> (i32, i32) {
    %c0_i32 = arith.constant 0 : i32
    %c0_i32_0 = arith.constant 0 : i32
    return %arg0, %c0_i32 : i32, i32
  }
}

</mosaic_0001>

<llo_original>
// kernel: tpu_custom_call.1
$region0: #{tpu_custom_call.1}
  #allocation0 [shape = 'u32[]', space=smem, size = 0x4, offset = 0x4, fixed_abs, tag = 'smem constant byte address 0x4 - core index']
  #allocation1 [shape = 'u32[72,128]{1,0:T(1,128)}', space=vmem, size = 0x9000, scoped, tag = 'internal scratch']
  %s0 = inlined_call_operand.hbm [shape: f32[8,13], index: 0, kind: input, shape index: {}]
  %s1 = inlined_call_operand.hbm [shape: bf16[13,33], index: 1, kind: input, shape index: {}]
  %s2 = inlined_call_operand.vmem [shape: bf16[33,33], index: 2, kind: input, shape index: {}]
  %s3 = inlined_call_operand.vmem [shape: bf16[33,17], index: 3, kind: input, shape index: {}]
  %s4 = inlined_call_operand.vmem [shape: bf16[17,33], index: 4, kind: input, shape index: {}]
  %s5 = inlined_call_operand.hbm [shape: bf16[33,33], index: 5, kind: input, shape index: {}]
  %s6 = inlined_call_operand.hbm [shape: bf16[33,81], index: 6, kind: input, shape index: {}]
  %s7 = inlined_call_operand.hbm [shape: bf16[81,2176], index: 7, kind: input, shape index: {}]
  %s8 = inlined_call_operand.hbm [shape: f32[8,128], index: 8, kind: output, shape index: {}]
  %s9 = sld [smem:[#allocation0]]
  $region62: #{tpu_custom_call.1} parent=0
    _
  %s11 = ssub.s32 1, %s9
  %s12 = scalar_select 0, %s11, %s9
  $region1: #{tpu_custom_call.1} parent=0
    #allocation2 [shape = 'u8[4096]{0}', space=vmem, size = 0x1000, scoped, tag = 'input window, operand 0, single buffered']
    #allocation3 [shape = 's32[1]{0}', space=sflag, size = 0x4, scoped, tag = 'scoped memory for tpu_custom_call.1']
    #allocation4 [shape = 's32[1]{0}', space=sflag, size = 0x4, scoped, tag = 'scoped memory for tpu_custom_call.1']
    #allocation5 [shape = 'u8[4096]{0}', space=vmem, size = 0x1000, scoped, tag = 'input window, operand 1, single buffered']
    #allocation6 [shape = 's32[1]{0}', space=sflag, size = 0x4, scoped, tag = 'scoped memory for tpu_custom_call.1']
    #allocation7 [shape = 'u8[10240]{0}', space=vmem, size = 0x2800, scoped, tag = 'input window, operand 5, single buffered']
    #allocation8 [shape = 'u8[10240]{0}', space=vmem, size = 0x2800, scoped, tag = 'input window, operand 6, single buffered']
    #allocation9 [shape = 's32[1]{0}', space=sflag, size = 0x4, scoped, tag = 'scoped memory for tpu_custom_call.1']
    #allocation10 [shape = 'u8[382976]{0}', space=vmem, size = 0x5d800, scoped, tag = 'input window, operand 7, single buffered']
    #allocation11 [shape = 'u8[4096]{0}', space=vmem, size = 0x1000, scoped, tag = 'output window, operand 0, single buffered']
    %13 = vsyncpa [#allocation3], 0
    %14 = vsyncpa [#allocation6], 0
    %15 = vsyncpa [#allocation9], 0
    %16 = vsyncpa [#allocation4], 0
    // Predicated region
    $region2: #{tpu_custom_call.1} parent=1 // pred_check
      _
    $region3: #{tpu_custom_call.1} parent=1 // pred_check_branch
      %18 = sbr.rel (0) target = $region5
    $region4: #{tpu_custom_call.1} parent=1 // pred_region
      %20 = vsyncadd [#allocation3], 0
      %s22 = sshll.u32 %s0, 4
      %s23 = int_to_ptr.hbm [resolvable:$true] %s22
      %s24 = sshll.u32 [#allocation2], 4
      %s25 = int_to_ptr.vmem [resolvable:$true] %s24
      %27 = dma.hbm_to_vmem [thread:$0]  %s23, 128, %s25, [#allocation3]
    $region5: #{tpu_custom_call.1} parent=1 // pred_fallthru
      _
    // Predicated region
    $region6: #{tpu_custom_call.1} parent=1 // pred_check
      _
    $region7: #{tpu_custom_call.1} parent=1 // pred_check_branch
      %29 = sbr.rel (0) target = $region9
    $region8: #{tpu_custom_call.1} parent=1 // pred_region
      %31 = vsyncadd [#allocation6], 0
      %s32 = sshll.u32 %s1, 4
      %s33 = int_to_ptr.hbm [resolvable:$true] %s32
      %s34 = sshll.u32 [#allocation5], 4
      %s35 = int_to_ptr.vmem [resolvable:$true] %s34
      %40 = dma.hbm_to_vmem [thread:$0]  %s33, 128, %s35, [#allocation6], 64, 64, 4
    $region9: #{tpu_custom_call.1} parent=1 // pred_fallthru
      _
    // Predicated region
    $region10: #{tpu_custom_call.1} parent=1 // pred_check
      _
    $region11: #{tpu_custom_call.1} parent=1 // pred_check_branch
      %42 = sbr.rel (0) target = $region13
    $region12: #{tpu_custom_call.1} parent=1 // pred_region
      _
    $region13: #{tpu_custom_call.1} parent=1 // pred_fallthru
      _
    // Predicated region
    $region14: #{tpu_custom_call.1} parent=1 // pred_check
      _
    $region15: #{tpu_custom_call.1} parent=1 // pred_check_branch
      %44 = sbr.rel (0) target = $region17
    $region16: #{tpu_custom_call.1} parent=1 // pred_region
      _
    $region17: #{tpu_custom_call.1} parent=1 // pred_fallthru
      _
    // Predicated region
    $region18: #{tpu_custom_call.1} parent=1 // pred_check
      _
    $region19: #{tpu_custom_call.1} parent=1 // pred_check_branch
      %46 = sbr.rel (0) target = $region21
    $region20: #{tpu_custom_call.1} parent=1 // pred_region
      _
    $region21: #{tpu_custom_call.1} parent=1 // pred_fallthru
      _
    // Predicated region
    $region22: #{tpu_custom_call.1} parent=1 // pred_check
      _
    $region23: #{tpu_custom_call.1} parent=1 // pred_check_branch
      %48 = sbr.rel (0) target = $region25
    $region24: #{tpu_custom_call.1} parent=1 // pred_region
      %50 = vsyncadd [#allocation6], 0
      %s51 = sshll.u32 %s5, 4
      %s52 = int_to_ptr.hbm [resolvable:$true] %s51
      %s53 = sshll.u32 [#allocation7], 4
      %s54 = int_to_ptr.vmem [resolvable:$true] %s53
      %59 = dma.hbm_to_vmem [thread:$0]  %s52, 320, %s54, [#allocation6], 64, 64, 4
    $region25: #{tpu_custom_call.1} parent=1 // pred_fallthru
      _
    // Predicated region
    $region26: #{tpu_custom_call.1} parent=1 // pred_check
      _
    $region27: #{tpu_custom_call.1} parent=1 // pred_check_branch
      %61 = sbr.rel (0) target = $region29
    $region28: #{tpu_custom_call.1} parent=1 // pred_region
      %63 = vsyncadd [#allocation9], 0
      %s64 = sshll.u32 %s6, 4
      %s65 = int_to_ptr.hbm [resolvable:$true] %s64
      %s66 = sshll.u32 [#allocation8], 4
      %s67 = int_to_ptr.vmem [resolvable:$true] %s66
      %72 = dma.hbm_to_vmem [thread:$0]  %s65, 320, %s67, [#allocation9], 64, 64, 4
    $region29: #{tpu_custom_call.1} parent=1 // pred_fallthru
      _
    // Predicated region
    $region30: #{tpu_custom_call.1} parent=1 // pred_check
      _
    $region31: #{tpu_custom_call.1} parent=1 // pred_check_branch
      %74 = sbr.rel (0) target = $region33
    $region32: #{tpu_custom_call.1} parent=1 // pred_region
      %76 = vsyncadd [#allocation9], 0
      %s77 = sshll.u32 %s7, 4
      %s78 = int_to_ptr.hbm [resolvable:$true] %s77
      %s79 = sshll.u32 [#allocation10], 4
      %s80 = int_to_ptr.vmem [resolvable:$true] %s79
      %85 = dma.hbm_to_vmem [thread:$0]  %s78, 11968, %s80, [#allocation9], 1088, 1088, 68
    $region33: #{tpu_custom_call.1} parent=1 // pred_fallthru
      _
    // Predicated region
    $region34: #{tpu_custom_call.1} parent=1 // pred_check
      _
    $region35: #{tpu_custom_call.1} parent=1 // pred_check_branch
      %87 = sbr.rel (0) target = $region37
    $region36: #{tpu_custom_call.1} parent=1 // pred_region
      %89 = dma.done [#allocation3], 128
    $region37: #{tpu_custom_call.1} parent=1 // pred_fallthru
      _
    // Predicated region
    $region38: #{tpu_custom_call.1} parent=1 // pred_check
      _
    $region39: #{tpu_custom_call.1} parent=1 // pred_check_branch
      %91 = sbr.rel (0) target = $region41
    $region40: #{tpu_custom_call.1} parent=1 // pred_region
      %93 = dma.done [#allocation6], 128
    $region41: #{tpu_custom_call.1} parent=1 // pred_fallthru
      _
    // Predicated region
    $region42: #{tpu_custom_call.1} parent=1 // pred_check
      _
    $region43: #{tpu_custom_call.1} parent=1 // pred_check_branch
      %95 = sbr.rel (0) target = $region45
    $region44: #{tpu_custom_call.1} parent=1 // pred_region
      %97 = dma.done [#allocation6], 320
    $region45: #{tpu_custom_call.1} parent=1 // pred_fallthru
      _
    // Predicated region
    $region46: #{tpu_custom_call.1} parent=1 // pred_check
      _
    $region47: #{tpu_custom_call.1} parent=1 // pred_check_branch
      %99 = sbr.rel (0) target = $region49
    $region48: #{tpu_custom_call.1} parent=1 // pred_region
      %101 = dma.done [#allocation9], 320
    $region49: #{tpu_custom_call.1} parent=1 // pred_fallthru
      _
    // Predicated region
    $region50: #{tpu_custom_call.1} parent=1 // pred_check
      _
    $region51: #{tpu_custom_call.1} parent=1 // pred_check_branch
      %103 = sbr.rel (0) target = $region53
    $region52: #{tpu_custom_call.1} parent=1 // pred_region
      %105 = dma.done [#allocation9], 11968
    $region53: #{tpu_custom_call.1} parent=1 // pred_fallthru
      _
    %v107 = vld [vmem:[#allocation2] sm:$0xff]
    %v108 = vld [vmem:[#allocation5] sm:$0xf]
    %v109 = vld [vmem:[#allocation5 + $0x4] sm:$0x7]
    %v110 = vpack.c.bf16 %v107, %v107
    %v113 = vunpack.c.l.b16 %v108
    %v114 = vunpack.c.l.b16 %v109
    %v115 = vpack.c.b16 %v114, %v113
    %vm116 = vcmask 105472
    %v118 = vsel %vm116, %v110, 0
    %vm120 = vcmask 1045504
    %vm121 = vcmask 1046528
    %v122 = vsel %vm120, 4294967295, 65535
    %v123 = vsel %vm121, %v122, 0
    %v125 = vand.u32 %v115, %v123
    %127 = vmatpush.bf16.msra.mxu0 0
    %128 = vmatpush.bf16.msra.mxu0 0
    %129 = vmatpush.bf16.msra.mxu0 0
    %130 = vmatpush.bf16.msra.mxu0 0
    %131 = vmatpush.bf16.msra.mxu0 0
    %132 = vmatpush.bf16.msra.mxu0 0
    %133 = vmatpush.bf16.msra.mxu0 0
    %134 = vmatpush.bf16.msra.mxu0 %v125
    %135 = vmatmul.bf16.gmra.mxu0 %v118
    %v136 = vpop.f32.mrf.mxu0
    %v137 = vadd.f32 0.0, %v136
    %v138 = vpop.f32.mrf.mxu0
    %139 = vdwg.mxu0
    %vm140 = vcmp.gt.f32.partialorder %v137, 0.0
    %v141 = vmul.f32 %v137, 0.3
    %v142 = vsel %vm140, %v137, %v141
    %v143 = vld [vmem:[%s2] sm:$0xf]
    %v144 = vld [vmem:[%s2 + $0x4] sm:$0xf]
    %v145 = vld [vmem:[%s2 + $0x8] sm:$0xf]
    %v146 = vld [vmem:[%s2 + $0xc] sm:$0xf]
    %v147 = vld [vmem:[%s2 + $0x10] sm:$0x1]
    %v148 = vpack.c.bf16 %v142, %v142
    %v154 = vunpack.c.l.b16 %v143
    %v155 = vunpack.c.l.b16 %v144
    %v156 = vunpack.c.l.b16 %v145
    %v157 = vunpack.c.l.b16 %v146
    %v158 = vunpack.c.l.b16 %v147
    %v159 = vpack.c.b16 %v155, %v154
    %v160 = vpack.c.b16 %v157, %v156
    %v161 = vpack.c.b16 %v158, %v158
    %vm164 = vcmask 269312
    %v166 = vsel %vm164, %v148, 0
    %vm168 = vcmask 1040384
    %v169 = vsel 0, 4294967295, 65535
    %v170 = vsel %vm168, %v169, 0
    %v172 = vand.u32 %v161, %v170
    %174 = vmatpush.bf16.msra.mxu0 0
    %175 = vmatpush.bf16.msra.mxu0 0
    %176 = vmatpush.bf16.msra.mxu0 0
    %177 = vmatpush.bf16.msra.mxu0 0
    %178 = vmatpush.bf16.msra.mxu0 0
    %179 = vmatpush.bf16.msra.mxu0 %v172
    %180 = vmatpush.bf16.msra.mxu0 %v160
    %181 = vmatpush.bf16.msra.mxu0 %v159
    %182 = vmatmul.bf16.gmra.mxu0 %v166
    %v183 = vpop.f32.mrf.mxu0
    %v184 = vadd.f32 0.0, %v183
    %v185 = vpop.f32.mrf.mxu0
    %186 = vdwg.mxu0
    %vm187 = vcmp.gt.f32.partialorder %v184, 0.0
    %v188 = vmul.f32 %v184, 0.3
    %v189 = vsel %vm187, %v184, %v188
    %v190 = vld [vmem:[%s3] sm:$0xf]
    %v191 = vld [vmem:[%s3 + $0x4] sm:$0xf]
    %v192 = vld [vmem:[%s3 + $0x8] sm:$0xf]
    %v193 = vld [vmem:[%s3 + $0xc] sm:$0xf]
    %v194 = vld [vmem:[%s3 + $0x10] sm:$0x1]
    %v195 = vpack.c.bf16 %v189, %v189
    %v201 = vunpack.c.l.b16 %v190
    %v202 = vunpack.c.l.b16 %v191
    %v203 = vunpack.c.l.b16 %v192
    %v204 = vunpack.c.l.b16 %v193
    %v205 = vunpack.c.l.b16 %v194
    %v206 = vpack.c.b16 %v202, %v201
    %v207 = vpack.c.b16 %v204, %v203
    %v208 = vpack.c.b16 %v205, %v205
    %v212 = vsel %vm164, %v195, 0
    %v215 = vand.u32 %v208, %v170
    %217 = vmatpush.bf16.msra.mxu0 0
    %218 = vmatpush.bf16.msra.mxu0 0
    %219 = vmatpush.bf16.msra.mxu0 0
    %220 = vmatpush.bf16.msra.mxu0 0
    %221 = vmatpush.bf16.msra.mxu0 0
    %222 = vmatpush.bf16.msra.mxu0 %v215
    %223 = vmatpush.bf16.msra.mxu0 %v207
    %224 = vmatpush.bf16.msra.mxu0 %v206
    %225 = vmatmul.bf16.gmra.mxu0 %v212
    %v226 = vpop.f32.mrf.mxu0
    %v227 = vadd.f32 0.0, %v226
    %v228 = vpop.f32.mrf.mxu0
    %229 = vdwg.mxu0
    %v230 = vld [vmem:[%s4] sm:$0xf]
    %v231 = vld [vmem:[%s4 + $0x4] sm:$0xf]
    %v232 = vld [vmem:[%s4 + $0x8] sm:$0x1]
    %v233 = vpack.c.bf16 %v227, %v227
    %v237 = vunpack.c.l.b16 %v230
    %v238 = vunpack.c.l.b16 %v231
    %v239 = vunpack.c.l.b16 %v232
    %v240 = vpack.c.b16 %v238, %v237
    %v241 = vpack.c.b16 %v239, %v239
    %vm243 = vcmask 138240
    %v245 = vsel %vm243, %v233, 0
    %v248 = vand.u32 %v241, %v170
    %250 = vmatpush.bf16.msra.mxu0 0
    %251 = vmatpush.bf16.msra.mxu0 0
    %252 = vmatpush.bf16.msra.mxu0 0
    %253 = vmatpush.bf16.msra.mxu0 0
    %254 = vmatpush.bf16.msra.mxu0 0
    %255 = vmatpush.bf16.msra.mxu0 0
    %256 = vmatpush.bf16.msra.mxu0 %v248
    %257 = vmatpush.bf16.msra.mxu0 %v240
    %258 = vmatmul.bf16.gmra.mxu0 %v245
    %v259 = vpop.f32.mrf.mxu0
    %v260 = vadd.f32 0.0, %v259
    %v261 = vpop.f32.mrf.mxu0
    %262 = vdwg.mxu0
    %v263 = vmax.f32 %v260, 0.0
    %v264 = vld [vmem:[#allocation7] sm:$0xf]
    %v265 = vld [vmem:[#allocation7 + $0x4] sm:$0xf]
    %v266 = vld [vmem:[#allocation7 + $0x8] sm:$0xf]
    %v267 = vld [vmem:[#allocation7 + $0xc] sm:$0xf]
    %v268 = vld [vmem:[#allocation7 + $0x10] sm:$0x1]
    %v269 = vpack.c.bf16 %v263, %v263
    %v275 = vunpack.c.l.b16 %v264
    %v276 = vunpack.c.l.b16 %v265
    %v277 = vunpack.c.l.b16 %v266
    %v278 = vunpack.c.l.b16 %v267
    %v279 = vunpack.c.l.b16 %v268
    %v280 = vpack.c.b16 %v276, %v275
    %v281 = vpack.c.b16 %v278, %v277
    %v282 = vpack.c.b16 %v279, %v279
    %v286 = vsel %vm164, %v269, 0
    %v289 = vand.u32 %v282, %v170
    %291 = vmatpush.bf16.msra.mxu0 0
    %292 = vmatpush.bf16.msra.mxu0 0
    %293 = vmatpush.bf16.msra.mxu0 0
    %294 = vmatpush.bf16.msra.mxu0 0
    %295 = vmatpush.bf16.msra.mxu0 0
    %296 = vmatpush.bf16.msra.mxu0 %v289
    %297 = vmatpush.bf16.msra.mxu0 %v281
    %298 = vmatpush.bf16.msra.mxu0 %v280
    %299 = vmatmul.bf16.gmra.mxu0 %v286
    %v300 = vpop.f32.mrf.mxu0
    %v301 = vadd.f32 0.0, %v300
    %v302 = vpop.f32.mrf.mxu0
    %303 = vdwg.mxu0
    %v304 = vmax.f32 %v301, 0.0
    %v305 = vld [vmem:[#allocation8] sm:$0xf]
    %v306 = vld [vmem:[#allocation8 + $0x4] sm:$0xf]
    %v307 = vld [vmem:[#allocation8 + $0x8] sm:$0xf]
    %v308 = vld [vmem:[#allocation8 + $0xc] sm:$0xf]
    %v309 = vld [vmem:[#allocation8 + $0x10] sm:$0x1]
    %v310 = vpack.c.bf16 %v304, %v304
    %v316 = vunpack.c.l.b16 %v305
    %v317 = vunpack.c.l.b16 %v306
    %v318 = vunpack.c.l.b16 %v307
    %v319 = vunpack.c.l.b16 %v308
    %v320 = vunpack.c.l.b16 %v309
    %v321 = vpack.c.b16 %v317, %v316
    %v322 = vpack.c.b16 %v319, %v318
    %v323 = vpack.c.b16 %v320, %v320
    %v327 = vsel %vm164, %v310, 0
    %v330 = vand.u32 %v323, %v170
    %332 = vmatpush.bf16.msra.mxu0 0
    %333 = vmatpush.bf16.msra.mxu0 0
    %334 = vmatpush.bf16.msra.mxu0 0
    %335 = vmatpush.bf16.msra.mxu0 0
    %336 = vmatpush.bf16.msra.mxu0 0
    %337 = vmatpush.bf16.msra.mxu0 %v330
    %338 = vmatpush.bf16.msra.mxu0 %v322
    %339 = vmatpush.bf16.msra.mxu0 %v321
    %340 = vmatmul.bf16.gmra.mxu0 %v327
    %v341 = vpop.f32.mrf.mxu0
    %v342 = vadd.f32 0.0, %v341
    %v343 = vpop.f32.mrf.mxu0
    %344 = vdwg.mxu0
    %v345 = vmax.f32 %v342, 0.0
    %v346 = vld [vmem:[#allocation10] sm:$0xff]
    %v347 = vld [vmem:[#allocation10 + $0x8] sm:$0xff]
    %v348 = vld [vmem:[#allocation10 + $0x10] sm:$0xff]
    %v349 = vld [vmem:[#allocation10 + $0x18] sm:$0xff]
    %v350 = vld [vmem:[#allocation10 + $0x20] sm:$0xff]
    %v351 = vld [vmem:[#allocation10 + $0x28] sm:$0xff]
    %v352 = vld [vmem:[#allocation10 + $0x30] sm:$0xff]
    %v353 = vld [vmem:[#allocation10 + $0x38] sm:$0xff]
    %v354 = vld [vmem:[#allocation10 + $0x40] sm:$0xf]
    %v355 = vld [vmem:[#allocation10 + $0x44] sm:$0xff]
    %v356 = vld [vmem:[#allocation10 + $0x4c] sm:$0xff]
    %v357 = vld [vmem:[#allocation10 + $0x54] sm:$0xff]
    %v358 = vld [vmem:[#allocation10 + $0x5c] sm:$0xff]
    %v359 = vld [vmem:[#allocation10 + $0x64] sm:$0xff]
    %v360 = vld [vmem:[#allocation10 + $0x6c] sm:$0xff]
    %v361 = vld [vmem:[#allocation10 + $0x74] sm:$0xff]
    %v362 = vld [vmem:[#allocation10 + $0x7c] sm:$0xff]
    %v363 = vld [vmem:[#allocation10 + $0x84] sm:$0xf]
    %v364 = vld [vmem:[#allocation10 + $0x88] sm:$0xff]
    %v365 = vld [vmem:[#allocation10 + $0x90] sm:$0xff]
    %v366 = vld [vmem:[#allocation10 + $0x98] sm:$0xff]
    %v367 = vld [vmem:[#allocation10 + $0xa0] sm:$0xff]
    %v368 = vld [vmem:[#allocation10 + $0xa8] sm:$0xff]
    %v369 = vld [vmem:[#allocation10 + $0xb0] sm:$0xff]
    %v370 = vld [vmem:[#allocation10 + $0xb8] sm:$0xff]
    %v371 = vld [vmem:[#allocation10 + $0xc0] sm:$0xff]
    %v372 = vld [vmem:[#allocation10 + $0xc8] sm:$0xf]
    %v373 = vld [vmem:[#allocation10 + $0xcc] sm:$0xff]
    %v374 = vld [vmem:[#allocation10 + $0xd4] sm:$0xff]
    %v375 = vld [vmem:[#allocation10 + $0xdc] sm:$0xff]
    %v376 = vld [vmem:[#allocation10 + $0xe4] sm:$0xff]
    %v377 = vld [vmem:[#allocation10 + $0xec] sm:$0xff]
    %v378 = vld [vmem:[#allocation10 + $0xf4] sm:$0xff]
    %v379 = vld [vmem:[#allocation10 + $0xfc] sm:$0xff]
    %v380 = vld [vmem:[#allocation10 + $0x104] sm:$0xff]
    %v381 = vld [vmem:[#allocation10 + $0x10c] sm:$0xf]
    %v382 = vld [vmem:[#allocation10 + $0x110] sm:$0xff]
    %v383 = vld [vmem:[#allocation10 + $0x118] sm:$0xff]
    %v384 = vld [vmem:[#allocation10 + $0x120] sm:$0xff]
    %v385 = vld [vmem:[#allocation10 + $0x128] sm:$0xff]
    %v386 = vld [vmem:[#allocation10 + $0x130] sm:$0xff]
    %v387 = vld [vmem:[#allocation10 + $0x138] sm:$0xff]
    %v388 = vld [vmem:[#allocation10 + $0x140] sm:$0xff]
    %v389 = vld [vmem:[#allocation10 + $0x148] sm:$0xff]
    %v390 = vld [vmem:[#allocation10 + $0x150] sm:$0xf]
    %v391 = vld [vmem:[#allocation10 + $0x154] sm:$0xff]
    %v392 = vld [vmem:[#allocation10 + $0x15c] sm:$0xff]
    %v393 = vld [vmem:[#allocation10 + $0x164] sm:$0xff]
    %v394 = vld [vmem:[#allocation10 + $0x16c] sm:$0xff]
    %v395 = vld [vmem:[#allocation10 + $0x174] sm:$0xff]
    %v396 = vld [vmem:[#allocation10 + $0x17c] sm:$0xff]
    %v397 = vld [vmem:[#allocation10 + $0x184] sm:$0xff]
    %v398 = vld [vmem:[#allocation10 + $0x18c] sm:$0xff]
    %v399 = vld [vmem:[#allocation10 + $0x194] sm:$0xf]
    %v400 = vld [vmem:[#allocation10 + $0x198] sm:$0xff]
    %v401 = vld [vmem:[#allocation10 + $0x1a0] sm:$0xff]
    %v402 = vld [vmem:[#allocation10 + $0x1a8] sm:$0xff]
    %v403 = vld [vmem:[#allocation10 + $0x1b0] sm:$0xff]
    %v404 = vld [vmem:[#allocation10 + $0x1b8] sm:$0xff]
    %v405 = vld [vmem:[#allocation10 + $0x1c0] sm:$0xff]
    %v406 = vld [vmem:[#allocation10 + $0x1c8] sm:$0xff]
    %v407 = vld [vmem:[#allocation10 + $0x1d0] sm:$0xff]
    %v408 = vld [vmem:[#allocation10 + $0x1d8] sm:$0xf]
    %v409 = vld [vmem:[#allocation10 + $0x1dc] sm:$0xff]
    %v410 = vld [vmem:[#allocation10 + $0x1e4] sm:$0xff]
    %v411 = vld [vmem:[#allocation10 + $0x1ec] sm:$0xff]
    %v412 = vld [vmem:[#allocation10 + $0x1f4] sm:$0xff]
    %v413 = vld [vmem:[#allocation10 + $0x1fc] sm:$0xff]
    %v414 = vld [vmem:[#allocation10 + $0x204] sm:$0xff]
    %v415 = vld [vmem:[#allocation10 + $0x20c] sm:$0xff]
    %v416 = vld [vmem:[#allocation10 + $0x214] sm:$0xff]
    %v417 = vld [vmem:[#allocation10 + $0x21c] sm:$0xf]
    %v418 = vld [vmem:[#allocation10 + $0x220] sm:$0xff]
    %v419 = vld [vmem:[#allocation10 + $0x228] sm:$0xff]
    %v420 = vld [vmem:[#allocation10 + $0x230] sm:$0xff]
    %v421 = vld [vmem:[#allocation10 + $0x238] sm:$0xff]
    %v422 = vld [vmem:[#allocation10 + $0x240] sm:$0xff]
    %v423 = vld [vmem:[#allocation10 + $0x248] sm:$0xff]
    %v424 = vld [vmem:[#allocation10 + $0x250] sm:$0xff]
    %v425 = vld [vmem:[#allocation10 + $0x258] sm:$0xff]
    %v426 = vld [vmem:[#allocation10 + $0x260] sm:$0xf]
    %v427 = vld [vmem:[#allocation10 + $0x264] sm:$0xff]
    %v428 = vld [vmem:[#allocation10 + $0x26c] sm:$0xff]
    %v429 = vld [vmem:[#allocation10 + $0x274] sm:$0xff]
    %v430 = vld [vmem:[#allocation10 + $0x27c] sm:$0xff]
    %v431 = vld [vmem:[#allocation10 + $0x284] sm:$0xff]
    %v432 = vld [vmem:[#allocation10 + $0x28c] sm:$0xff]
    %v433 = vld [vmem:[#allocation10 + $0x294] sm:$0xff]
    %v434 = vld [vmem:[#allocation10 + $0x29c] sm:$0xff]
    %v435 = vld [vmem:[#allocation10 + $0x2a4] sm:$0xf]
    %v436 = vld [vmem:[#allocation10 + $0x2a8] sm:$0x11]
    %v437 = vld [vmem:[#allocation10 + $0x2b0] sm:$0x11]
    %v438 = vld [vmem:[#allocation10 + $0x2b8] sm:$0x11]
    %v439 = vld [vmem:[#allocation10 + $0x2c0] sm:$0x11]
    %v440 = vld [vmem:[#allocation10 + $0x2c8] sm:$0x11]
    %v441 = vld [vmem:[#allocation10 + $0x2d0] sm:$0x11]
    %v442 = vld [vmem:[#allocation10 + $0x2d8] sm:$0x11]
    %v443 = vld [vmem:[#allocation10 + $0x2e0] sm:$0x11]
    %v444 = vld [vmem:[#allocation10 + $0x2e8] sm:$0x1]
    %v445 = vpack.c.bf16 %v345, %v345
    %v545 = vunpack.c.l.b16 %v346
    %v546 = vunpack.c.h.b16 %v346
    %v547 = vunpack.c.l.b16 %v347
    %v548 = vunpack.c.h.b16 %v347
    %v549 = vunpack.c.l.b16 %v348
    %v550 = vunpack.c.h.b16 %v348
    %v551 = vunpack.c.l.b16 %v349
    %v552 = vunpack.c.h.b16 %v349
    %v553 = vunpack.c.l.b16 %v350
    %v554 = vunpack.c.h.b16 %v350
    %v555 = vunpack.c.l.b16 %v351
    %v556 = vunpack.c.h.b16 %v351
    %v557 = vunpack.c.l.b16 %v352
    %v558 = vunpack.c.h.b16 %v352
    %v559 = vunpack.c.l.b16 %v353
    %v560 = vunpack.c.h.b16 %v353
    %v561 = vunpack.c.l.b16 %v354
    %v562 = vunpack.c.l.b16 %v355
    %v563 = vunpack.c.h.b16 %v355
    %v564 = vunpack.c.l.b16 %v356
    %v565 = vunpack.c.h.b16 %v356
    %v566 = vunpack.c.l.b16 %v357
    %v567 = vunpack.c.h.b16 %v357
    %v568 = vunpack.c.l.b16 %v358
    %v569 = vunpack.c.h.b16 %v358
    %v570 = vunpack.c.l.b16 %v359
    %v571 = vunpack.c.h.b16 %v359
    %v572 = vunpack.c.l.b16 %v360
    %v573 = vunpack.c.h.b16 %v360
    %v574 = vunpack.c.l.b16 %v361
    %v575 = vunpack.c.h.b16 %v361
    %v576 = vunpack.c.l.b16 %v362
    %v577 = vunpack.c.h.b16 %v362
    %v578 = vunpack.c.l.b16 %v363
    %v579 = vunpack.c.l.b16 %v364
    %v580 = vunpack.c.h.b16 %v364
    %v581 = vunpack.c.l.b16 %v365
    %v582 = vunpack.c.h.b16 %v365
    %v583 = vunpack.c.l.b16 %v366
    %v584 = vunpack.c.h.b16 %v366
    %v585 = vunpack.c.l.b16 %v367
    %v586 = vunpack.c.h.b16 %v367
    %v587 = vunpack.c.l.b16 %v368
    %v588 = vunpack.c.h.b16 %v368
    %v589 = vunpack.c.l.b16 %v369
    %v590 = vunpack.c.h.b16 %v369
    %v591 = vunpack.c.l.b16 %v370
    %v592 = vunpack.c.h.b16 %v370
    %v593 = vunpack.c.l.b16 %v371
    %v594 = vunpack.c.h.b16 %v371
    %v595 = vunpack.c.l.b16 %v372
    %v596 = vunpack.c.l.b16 %v373
    %v597 = vunpack.c.h.b16 %v373
    %v598 = vunpack.c.l.b16 %v374
    %v599 = vunpack.c.h.b16 %v374
    %v600 = vunpack.c.l.b16 %v375
    %v601 = vunpack.c.h.b16 %v375
    %v602 = vunpack.c.l.b16 %v376
    %v603 = vunpack.c.h.b16 %v376
    %v604 = vunpack.c.l.b16 %v377
    %v605 = vunpack.c.h.b16 %v377
    %v606 = vunpack.c.l.b16 %v378
    %v607 = vunpack.c.h.b16 %v378
    %v608 = vunpack.c.l.b16 %v379
    %v609 = vunpack.c.h.b16 %v379
    %v610 = vunpack.c.l.b16 %v380
    %v611 = vunpack.c.h.b16 %v380
    %v612 = vunpack.c.l.b16 %v381
    %v613 = vunpack.c.l.b16 %v382
    %v614 = vunpack.c.h.b16 %v382
    %v615 = vunpack.c.l.b16 %v383
    %v616 = vunpack.c.h.b16 %v383
    %v617 = vunpack.c.l.b16 %v384
    %v618 = vunpack.c.h.b16 %v384
    %v619 = vunpack.c.l.b16 %v385
    %v620 = vunpack.c.h.b16 %v385
    %v621 = vunpack.c.l.b16 %v386
    %v622 = vunpack.c.h.b16 %v386
    %v623 = vunpack.c.l.b16 %v387
    %v624 = vunpack.c.h.b16 %v387
    %v625 = vunpack.c.l.b16 %v388
    %v626 = vunpack.c.h.b16 %v388
    %v627 = vunpack.c.l.b16 %v389
    %v628 = vunpack.c.h.b16 %v389
    %v629 = vunpack.c.l.b16 %v390
    %v630 = vunpack.c.l.b16 %v391
    %v631 = vunpack.c.h.b16 %v391
    %v632 = vunpack.c.l.b16 %v392
    %v633 = vunpack.c.h.b16 %v392
    %v634 = vunpack.c.l.b16 %v393
    %v635 = vunpack.c.h.b16 %v393
    %v636 = vunpack.c.l.b16 %v394
    %v637 = vunpack.c.h.b16 %v394
    %v638 = vunpack.c.l.b16 %v395
    %v639 = vunpack.c.h.b16 %v395
    %v640 = vunpack.c.l.b16 %v396
    %v641 = vunpack.c.h.b16 %v396
    %v642 = vunpack.c.l.b16 %v397
    %v643 = vunpack.c.h.b16 %v397
    %v644 = vunpack.c.l.b16 %v398
    %v645 = vunpack.c.h.b16 %v398
    %v646 = vunpack.c.l.b16 %v399
    %v647 = vunpack.c.l.b16 %v400
    %v648 = vunpack.c.h.b16 %v400
    %v649 = vunpack.c.l.b16 %v401
    %v650 = vunpack.c.h.b16 %v401
    %v651 = vunpack.c.l.b16 %v402
    %v652 = vunpack.c.h.b16 %v402
    %v653 = vunpack.c.l.b16 %v403
    %v654 = vunpack.c.h.b16 %v403
    %v655 = vunpack.c.l.b16 %v404
    %v656 = vunpack.c.h.b16 %v404
    %v657 = vunpack.c.l.b16 %v405
    %v658 = vunpack.c.h.b16 %v405
    %v659 = vunpack.c.l.b16 %v406
    %v660 = vunpack.c.h.b16 %v406
    %v661 = vunpack.c.l.b16 %v407
    %v662 = vunpack.c.h.b16 %v407
    %v663 = vunpack.c.l.b16 %v408
    %v664 = vunpack.c.l.b16 %v409
    %v665 = vunpack.c.h.b16 %v409
    %v666 = vunpack.c.l.b16 %v410
    %v667 = vunpack.c.h.b16 %v410
    %v668 = vunpack.c.l.b16 %v411
    %v669 = vunpack.c.h.b16 %v411
    %v670 = vunpack.c.l.b16 %v412
    %v671 = vunpack.c.h.b16 %v412
    %v672 = vunpack.c.l.b16 %v413
    %v673 = vunpack.c.h.b16 %v413
    %v674 = vunpack.c.l.b16 %v414
    %v675 = vunpack.c.h.b16 %v414
    %v676 = vunpack.c.l.b16 %v415
    %v677 = vunpack.c.h.b16 %v415
    %v678 = vunpack.c.l.b16 %v416
    %v679 = vunpack.c.h.b16 %v416
    %v680 = vunpack.c.l.b16 %v417
    %v681 = vunpack.c.l.b16 %v418
    %v682 = vunpack.c.h.b16 %v418
    %v683 = vunpack.c.l.b16 %v419
    %v684 = vunpack.c.h.b16 %v419
    %v685 = vunpack.c.l.b16 %v420
    %v686 = vunpack.c.h.b16 %v420
    %v687 = vunpack.c.l.b16 %v421
    %v688 = vunpack.c.h.b16 %v421
    %v689 = vunpack.c.l.b16 %v422
    %v690 = vunpack.c.h.b16 %v422
    %v691 = vunpack.c.l.b16 %v423
    %v692 = vunpack.c.h.b16 %v423
    %v693 = vunpack.c.l.b16 %v424
    %v694 = vunpack.c.h.b16 %v424
    %v695 = vunpack.c.l.b16 %v425
    %v696 = vunpack.c.h.b16 %v425
    %v697 = vunpack.c.l.b16 %v426
    %v698 = vunpack.c.l.b16 %v427
    %v699 = vunpack.c.h.b16 %v427
    %v700 = vunpack.c.l.b16 %v428
    %v701 = vunpack.c.h.b16 %v428
    %v702 = vunpack.c.l.b16 %v429
    %v703 = vunpack.c.h.b16 %v429
    %v704 = vunpack.c.l.b16 %v430
    %v705 = vunpack.c.h.b16 %v430
    %v706 = vunpack.c.l.b16 %v431
    %v707 = vunpack.c.h.b16 %v431
    %v708 = vunpack.c.l.b16 %v432
    %v709 = vunpack.c.h.b16 %v432
    %v710 = vunpack.c.l.b16 %v433
    %v711 = vunpack.c.h.b16 %v433
    %v712 = vunpack.c.l.b16 %v434
    %v713 = vunpack.c.h.b16 %v434
    %v714 = vunpack.c.l.b16 %v435
    %v715 = vunpack.c.l.b16 %v436
    %v716 = vunpack.c.h.b16 %v436
    %v717 = vunpack.c.l.b16 %v437
    %v718 = vunpack.c.h.b16 %v437
    %v719 = vunpack.c.l.b16 %v438
    %v720 = vunpack.c.h.b16 %v438
    %v721 = vunpack.c.l.b16 %v439
    %v722 = vunpack.c.h.b16 %v439
    %v723 = vunpack.c.l.b16 %v440
    %v724 = vunpack.c.h.b16 %v440
    %v725 = vunpack.c.l.b16 %v441
    %v726 = vunpack.c.h.b16 %v441
    %v727 = vunpack.c.l.b16 %v442
    %v728 = vunpack.c.h.b16 %v442
    %v729 = vunpack.c.l.b16 %v443
    %v730 = vunpack.c.h.b16 %v443
    %v731 = vunpack.c.l.b16 %v444
    %v732 = vpack.c.b16 %v562, %v545
    %v733 = vpack.c.b16 %v563, %v546
    %v734 = vpack.c.b16 %v564, %v547
    %v735 = vpack.c.b16 %v565, %v548
    %v736 = vpack.c.b16 %v566, %v549
    %v737 = vpack.c.b16 %v567, %v550
    %v738 = vpack.c.b16 %v568, %v551
    %v739 = vpack.c.b16 %v569, %v552
    %v740 = vpack.c.b16 %v570, %v553
    %v741 = vpack.c.b16 %v571, %v554
    %v742 = vpack.c.b16 %v572, %v555
    %v743 = vpack.c.b16 %v573, %v556
    %v744 = vpack.c.b16 %v574, %v557
    %v745 = vpack.c.b16 %v575, %v558
    %v746 = vpack.c.b16 %v576, %v559
    %v747 = vpack.c.b16 %v577, %v560
    %v748 = vpack.c.b16 %v578, %v561
    %v749 = vpack.c.b16 %v596, %v579
    %v750 = vpack.c.b16 %v597, %v580
    %v751 = vpack.c.b16 %v598, %v581
    %v752 = vpack.c.b16 %v599, %v582
    %v753 = vpack.c.b16 %v600, %v583
    %v754 = vpack.c.b16 %v601, %v584
    %v755 = vpack.c.b16 %v602, %v585
    %v756 = vpack.c.b16 %v603, %v586
    %v757 = vpack.c.b16 %v604, %v587
    %v758 = vpack.c.b16 %v605, %v588
    %v759 = vpack.c.b16 %v606, %v589
    %v760 = vpack.c.b16 %v607, %v590
    %v761 = vpack.c.b16 %v608, %v591
    %v762 = vpack.c.b16 %v609, %v592
    %v763 = vpack.c.b16 %v610, %v593
    %v764 = vpack.c.b16 %v611, %v594
    %v765 = vpack.c.b16 %v612, %v595
    %v766 = vpack.c.b16 %v630, %v613
    %v767 = vpack.c.b16 %v631, %v614
    %v768 = vpack.c.b16 %v632, %v615
    %v769 = vpack.c.b16 %v633, %v616
    %v770 = vpack.c.b16 %v634, %v617
    %v771 = vpack.c.b16 %v635, %v618
    %v772 = vpack.c.b16 %v636, %v619
    %v773 = vpack.c.b16 %v637, %v620
    %v774 = vpack.c.b16 %v638, %v621
    %v775 = vpack.c.b16 %v639, %v622
    %v776 = vpack.c.b16 %v640, %v623
    %v777 = vpack.c.b16 %v641, %v624
    %v778 = vpack.c.b16 %v642, %v625
    %v779 = vpack.c.b16 %v643, %v626
    %v780 = vpack.c.b16 %v644, %v627
    %v781 = vpack.c.b16 %v645, %v628
    %v782 = vpack.c.b16 %v646, %v629
    %v783 = vpack.c.b16 %v664, %v647
    %v784 = vpack.c.b16 %v665, %v648
    %v785 = vpack.c.b16 %v666, %v649
    %v786 = vpack.c.b16 %v667, %v650
    %v787 = vpack.c.b16 %v668, %v651
    %v788 = vpack.c.b16 %v669, %v652
    %v789 = vpack.c.b16 %v670, %v653
    %v790 = vpack.c.b16 %v671, %v654
    %v791 = vpack.c.b16 %v672, %v655
    %v792 = vpack.c.b16 %v673, %v656
    %v793 = vpack.c.b16 %v674, %v657
    %v794 = vpack.c.b16 %v675, %v658
    %v795 = vpack.c.b16 %v676, %v659
    %v796 = vpack.c.b16 %v677, %v660
    %v797 = vpack.c.b16 %v678, %v661
    %v798 = vpack.c.b16 %v679, %v662
    %v799 = vpack.c.b16 %v680, %v663
    %v800 = vpack.c.b16 %v698, %v681
    %v801 = vpack.c.b16 %v699, %v682
    %v802 = vpack.c.b16 %v700, %v683
    %v803 = vpack.c.b16 %v701, %v684
    %v804 = vpack.c.b16 %v702, %v685
    %v805 = vpack.c.b16 %v703, %v686
    %v806 = vpack.c.b16 %v704, %v687
    %v807 = vpack.c.b16 %v705, %v688
    %v808 = vpack.c.b16 %v706, %v689
    %v809 = vpack.c.b16 %v707, %v690
    %v810 = vpack.c.b16 %v708, %v691
    %v811 = vpack.c.b16 %v709, %v692
    %v812 = vpack.c.b16 %v710, %v693
    %v813 = vpack.c.b16 %v711, %v694
    %v814 = vpack.c.b16 %v712, %v695
    %v815 = vpack.c.b16 %v713, %v696
    %v816 = vpack.c.b16 %v714, %v697
    %v817 = vpack.c.b16 %v715, %v715
    %v818 = vpack.c.b16 %v716, %v716
    %v819 = vpack.c.b16 %v717, %v717
    %v820 = vpack.c.b16 %v718, %v718
    %v821 = vpack.c.b16 %v719, %v719
    %v822 = vpack.c.b16 %v720, %v720
    %v823 = vpack.c.b16 %v721, %v721
    %v824 = vpack.c.b16 %v722, %v722
    %v825 = vpack.c.b16 %v723, %v723
    %v826 = vpack.c.b16 %v724, %v724
    %v827 = vpack.c.b16 %v725, %v725
    %v828 = vpack.c.b16 %v726, %v726
    %v829 = vpack.c.b16 %v727, %v727
    %v830 = vpack.c.b16 %v728, %v728
    %v831 = vpack.c.b16 %v729, %v729
    %v832 = vpack.c.b16 %v730, %v730
    %v833 = vpack.c.b16 %v731, %v731
    %vm919 = vcmask 662528
    %v921 = vsel %vm919, %v445, 0
    %v924 = vand.u32 %v817, %v170
    %v927 = vand.u32 %v818, %v170
    %v930 = vand.u32 %v819, %v170
    %v933 = vand.u32 %v820, %v170
    %v936 = vand.u32 %v821, %v170
    %v939 = vand.u32 %v822, %v170
    %v942 = vand.u32 %v823, %v170
    %v945 = vand.u32 %v824, %v170
    %v948 = vand.u32 %v825, %v170
    %v951 = vand.u32 %v826, %v170
    %v954 = vand.u32 %v827, %v170
    %v957 = vand.u32 %v828, %v170
    %v960 = vand.u32 %v829, %v170
    %v963 = vand.u32 %v830, %v170
    %v966 = vand.u32 %v831, %v170
    %v969 = vand.u32 %v832, %v170
    %v972 = vand.u32 %v833, %v170
    %974 = vmatpush.bf16.msra.mxu0 0
    %975 = vmatpush.bf16.msra.mxu0 0
    %976 = vmatpush.bf16.msra.mxu0 %v924
    %977 = vmatpush.bf16.msra.mxu0 %v800
    %978 = vmatpush.bf16.msra.mxu0 %v783
    %979 = vmatpush.bf16.msra.mxu0 %v766
    %980 = vmatpush.bf16.msra.mxu0 %v749
    %981 = vmatpush.bf16.msra.mxu0 %v732
    %982 = vmatmul.bf16.gmra.mxu0 %v921
    %v983 = vpop.f32.mrf.mxu0
    %v984 = vadd.f32 0.0, %v983
    %v985 = vpop.f32.mrf.mxu0
    %986 = vdwg.mxu0
    %987 = vmatpush.bf16.msra.mxu0 0
    %988 = vmatpush.bf16.msra.mxu0 0
    %989 = vmatpush.bf16.msra.mxu0 %v927
    %990 = vmatpush.bf16.msra.mxu0 %v801
    %991 = vmatpush.bf16.msra.mxu0 %v784
    %992 = vmatpush.bf16.msra.mxu0 %v767
    %993 = vmatpush.bf16.msra.mxu0 %v750
    %994 = vmatpush.bf16.msra.mxu0 %v733
    %995 = vmatmul.bf16.gmra.mxu0 %v921
    %v996 = vpop.f32.mrf.mxu0
    %v997 = vadd.f32 0.0, %v996
    %v998 = vpop.f32.mrf.mxu0
    %999 = vdwg.mxu0
    %1000 = vmatpush.bf16.msra.mxu0 0
    %1001 = vmatpush.bf16.msra.mxu0 0
    %1002 = vmatpush.bf16.msra.mxu0 %v930
    %1003 = vmatpush.bf16.msra.mxu0 %v802
    %1004 = vmatpush.bf16.msra.mxu0 %v785
    %1005 = vmatpush.bf16.msra.mxu0 %v768
    %1006 = vmatpush.bf16.msra.mxu0 %v751
    %1007 = vmatpush.bf16.msra.mxu0 %v734
    %1008 = vmatmul.bf16.gmra.mxu0 %v921
    %v1009 = vpop.f32.mrf.mxu0
    %v1010 = vadd.f32 0.0, %v1009
    %v1011 = vpop.f32.mrf.mxu0
    %1012 = vdwg.mxu0
    %1013 = vmatpush.bf16.msra.mxu0 0
    %1014 = vmatpush.bf16.msra.mxu0 0
    %1015 = vmatpush.bf16.msra.mxu0 %v933
    %1016 = vmatpush.bf16.msra.mxu0 %v803
    %1017 = vmatpush.bf16.msra.mxu0 %v786
    %1018 = vmatpush.bf16.msra.mxu0 %v769
    %1019 = vmatpush.bf16.msra.mxu0 %v752
    %1020 = vmatpush.bf16.msra.mxu0 %v735
    %1021 = vmatmul.bf16.gmra.mxu0 %v921
    %v1022 = vpop.f32.mrf.mxu0
    %v1023 = vadd.f32 0.0, %v1022
    %v1024 = vpop.f32.mrf.mxu0
    %1025 = vdwg.mxu0
    %1026 = vmatpush.bf16.msra.mxu0 0
    %1027 = vmatpush.bf16.msra.mxu0 0
    %1028 = vmatpush.bf16.msra.mxu0 %v936
    %1029 = vmatpush.bf16.msra.mxu0 %v804
    %1030 = vmatpush.bf16.msra.mxu0 %v787
    %1031 = vmatpush.bf16.msra.mxu0 %v770
    %1032 = vmatpush.bf16.msra.mxu0 %v753
    %1033 = vmatpush.bf16.msra.mxu0 %v736
    %1034 = vmatmul.bf16.gmra.mxu0 %v921
    %v1035 = vpop.f32.mrf.mxu0
    %v1036 = vadd.f32 0.0, %v1035
    %v1037 = vpop.f32.mrf.mxu0
    %1038 = vdwg.mxu0
    %1039 = vmatpush.bf16.msra.mxu0 0
    %1040 = vmatpush.bf16.msra.mxu0 0
    %1041 = vmatpush.bf16.msra.mxu0 %v939
    %1042 = vmatpush.bf16.msra.mxu0 %v805
    %1043 = vmatpush.bf16.msra.mxu0 %v788
    %1044 = vmatpush.bf16.msra.mxu0 %v771
    %1045 = vmatpush.bf16.msra.mxu0 %v754
    %1046 = vmatpush.bf16.msra.mxu0 %v737
    %1047 = vmatmul.bf16.gmra.mxu0 %v921
    %v1048 = vpop.f32.mrf.mxu0
    %v1049 = vadd.f32 0.0, %v1048
    %v1050 = vpop.f32.mrf.mxu0
    %1051 = vdwg.mxu0
    %1052 = vmatpush.bf16.msra.mxu0 0
    %1053 = vmatpush.bf16.msra.mxu0 0
    %1054 = vmatpush.bf16.msra.mxu0 %v942
    %1055 = vmatpush.bf16.msra.mxu0 %v806
    %1056 = vmatpush.bf16.msra.mxu0 %v789
    %1057 = vmatpush.bf16.msra.mxu0 %v772
    %1058 = vmatpush.bf16.msra.mxu0 %v755
    %1059 = vmatpush.bf16.msra.mxu0 %v738
    %1060 = vmatmul.bf16.gmra.mxu0 %v921
    %v1061 = vpop.f32.mrf.mxu0
    %v1062 = vadd.f32 0.0, %v1061
    %v1063 = vpop.f32.mrf.mxu0
    %1064 = vdwg.mxu0
    %1065 = vmatpush.bf16.msra.mxu0 0
    %1066 = vmatpush.bf16.msra.mxu0 0
    %1067 = vmatpush.bf16.msra.mxu0 %v945
    %1068 = vmatpush.bf16.msra.mxu0 %v807
    %1069 = vmatpush.bf16.msra.mxu0 %v790
    %1070 = vmatpush.bf16.msra.mxu0 %v773
    %1071 = vmatpush.bf16.msra.mxu0 %v756
    %1072 = vmatpush.bf16.msra.mxu0 %v739
    %1073 = vmatmul.bf16.gmra.mxu0 %v921
    %v1074 = vpop.f32.mrf.mxu0
    %v1075 = vadd.f32 0.0, %v1074
    %v1076 = vpop.f32.mrf.mxu0
    %1077 = vdwg.mxu0
    %1078 = vmatpush.bf16.msra.mxu0 0
    %1079 = vmatpush.bf16.msra.mxu0 0
    %1080 = vmatpush.bf16.msra.mxu0 %v948
    %1081 = vmatpush.bf16.msra.mxu0 %v808
    %1082 = vmatpush.bf16.msra.mxu0 %v791
    %1083 = vmatpush.bf16.msra.mxu0 %v774
    %1084 = vmatpush.bf16.msra.mxu0 %v757
    %1085 = vmatpush.bf16.msra.mxu0 %v740
    %1086 = vmatmul.bf16.gmra.mxu0 %v921
    %v1087 = vpop.f32.mrf.mxu0
    %v1088 = vadd.f32 0.0, %v1087
    %v1089 = vpop.f32.mrf.mxu0
    %1090 = vdwg.mxu0
    %1091 = vmatpush.bf16.msra.mxu0 0
    %1092 = vmatpush.bf16.msra.mxu0 0
    %1093 = vmatpush.bf16.msra.mxu0 %v951
    %1094 = vmatpush.bf16.msra.mxu0 %v809
    %1095 = vmatpush.bf16.msra.mxu0 %v792
    %1096 = vmatpush.bf16.msra.mxu0 %v775
    %1097 = vmatpush.bf16.msra.mxu0 %v758
    %1098 = vmatpush.bf16.msra.mxu0 %v741
    %1099 = vmatmul.bf16.gmra.mxu0 %v921
    %v1100 = vpop.f32.mrf.mxu0
    %v1101 = vadd.f32 0.0, %v1100
    %v1102 = vpop.f32.mrf.mxu0
    %1103 = vdwg.mxu0
    %1104 = vmatpush.bf16.msra.mxu0 0
    %1105 = vmatpush.bf16.msra.mxu0 0
    %1106 = vmatpush.bf16.msra.mxu0 %v954
    %1107 = vmatpush.bf16.msra.mxu0 %v810
    %1108 = vmatpush.bf16.msra.mxu0 %v793
    %1109 = vmatpush.bf16.msra.mxu0 %v776
    %1110 = vmatpush.bf16.msra.mxu0 %v759
    %1111 = vmatpush.bf16.msra.mxu0 %v742
    %1112 = vmatmul.bf16.gmra.mxu0 %v921
    %v1113 = vpop.f32.mrf.mxu0
    %v1114 = vadd.f32 0.0, %v1113
    %v1115 = vpop.f32.mrf.mxu0
    %1116 = vdwg.mxu0
    %1117 = vmatpush.bf16.msra.mxu0 0
    %1118 = vmatpush.bf16.msra.mxu0 0
    %1119 = vmatpush.bf16.msra.mxu0 %v957
    %1120 = vmatpush.bf16.msra.mxu0 %v811
    %1121 = vmatpush.bf16.msra.mxu0 %v794
    %1122 = vmatpush.bf16.msra.mxu0 %v777
    %1123 = vmatpush.bf16.msra.mxu0 %v760
    %1124 = vmatpush.bf16.msra.mxu0 %v743
    %1125 = vmatmul.bf16.gmra.mxu0 %v921
    %v1126 = vpop.f32.mrf.mxu0
    %v1127 = vadd.f32 0.0, %v1126
    %v1128 = vpop.f32.mrf.mxu0
    %1129 = vdwg.mxu0
    %1130 = vmatpush.bf16.msra.mxu0 0
    %1131 = vmatpush.bf16.msra.mxu0 0
    %1132 = vmatpush.bf16.msra.mxu0 %v960
    %1133 = vmatpush.bf16.msra.mxu0 %v812
    %1134 = vmatpush.bf16.msra.mxu0 %v795
    %1135 = vmatpush.bf16.msra.mxu0 %v778
    %1136 = vmatpush.bf16.msra.mxu0 %v761
    %1137 = vmatpush.bf16.msra.mxu0 %v744
    %1138 = vmatmul.bf16.gmra.mxu0 %v921
    %v1139 = vpop.f32.mrf.mxu0
    %v1140 = vadd.f32 0.0, %v1139
    %v1141 = vpop.f32.mrf.mxu0
    %1142 = vdwg.mxu0
    %1143 = vmatpush.bf16.msra.mxu0 0
    %1144 = vmatpush.bf16.msra.mxu0 0
    %1145 = vmatpush.bf16.msra.mxu0 %v963
    %1146 = vmatpush.bf16.msra.mxu0 %v813
    %1147 = vmatpush.bf16.msra.mxu0 %v796
    %1148 = vmatpush.bf16.msra.mxu0 %v779
    %1149 = vmatpush.bf16.msra.mxu0 %v762
    %1150 = vmatpush.bf16.msra.mxu0 %v745
    %1151 = vmatmul.bf16.gmra.mxu0 %v921
    %v1152 = vpop.f32.mrf.mxu0
    %v1153 = vadd.f32 0.0, %v1152
    %v1154 = vpop.f32.mrf.mxu0
    %1155 = vdwg.mxu0
    %1156 = vmatpush.bf16.msra.mxu0 0
    %1157 = vmatpush.bf16.msra.mxu0 0
    %1158 = vmatpush.bf16.msra.mxu0 %v966
    %1159 = vmatpush.bf16.msra.mxu0 %v814
    %1160 = vmatpush.bf16.msra.mxu0 %v797
    %1161 = vmatpush.bf16.msra.mxu0 %v780
    %1162 = vmatpush.bf16.msra.mxu0 %v763
    %1163 = vmatpush.bf16.msra.mxu0 %v746
    %1164 = vmatmul.bf16.gmra.mxu0 %v921
    %v1165 = vpop.f32.mrf.mxu0
    %v1166 = vadd.f32 0.0, %v1165
    %v1167 = vpop.f32.mrf.mxu0
    %1168 = vdwg.mxu0
    %1169 = vmatpush.bf16.msra.mxu0 0
    %1170 = vmatpush.bf16.msra.mxu0 0
    %1171 = vmatpush.bf16.msra.mxu0 %v969
    %1172 = vmatpush.bf16.msra.mxu0 %v815
    %1173 = vmatpush.bf16.msra.mxu0 %v798
    %1174 = vmatpush.bf16.msra.mxu0 %v781
    %1175 = vmatpush.bf16.msra.mxu0 %v764
    %1176 = vmatpush.bf16.msra.mxu0 %v747
    %1177 = vmatmul.bf16.gmra.mxu0 %v921
    %v1178 = vpop.f32.mrf.mxu0
    %v1179 = vadd.f32 0.0, %v1178
    %v1180 = vpop.f32.mrf.mxu0
    %1181 = vdwg.mxu0
    %1182 = vmatpush.bf16.msra.mxu0 0
    %1183 = vmatpush.bf16.msra.mxu0 0
    %1184 = vmatpush.bf16.msra.mxu0 %v972
    %1185 = vmatpush.bf16.msra.mxu0 %v816
    %1186 = vmatpush.bf16.msra.mxu0 %v799
    %1187 = vmatpush.bf16.msra.mxu0 %v782
    %1188 = vmatpush.bf16.msra.mxu0 %v765
    %1189 = vmatpush.bf16.msra.mxu0 %v748
    %1190 = vmatmul.bf16.gmra.mxu0 %v921
    %v1191 = vpop.f32.mrf.mxu0
    %v1192 = vadd.f32 0.0, %v1191
    %v1193 = vpop.f32.mrf.mxu0
    %1194 = vdwg.mxu0
    %v1195 = vmul.f32 %v997, %v1101
    %v1196 = vadd.f32 %v984, %v1195
    %v1197 = vmul.f32 %v1010, %v1114
    %v1198 = vadd.f32 %v1196, %v1197
    %v1199 = vmul.f32 %v1023, %v1127
    %v1200 = vadd.f32 %v1198, %v1199
    %v1201 = vmul.f32 %v1036, %v1140
    %v1202 = vadd.f32 %v1200, %v1201
    %v1203 = vmul.f32 %v1049, %v1153
    %v1204 = vadd.f32 %v1202, %v1203
    %v1205 = vmul.f32 %v1062, %v1166
    %v1206 = vadd.f32 %v1204, %v1205
    %v1207 = vmul.f32 %v1075, %v1179
    %v1208 = vadd.f32 %v1206, %v1207
    %v1209 = vmul.f32 %v1088, %v1192
    %v1210 = vadd.f32 %v1208, %v1209
    %1211 = vst [vmem:[#allocation11] sm:$0xff] %v1210
    // Predicated region
    $region54: #{tpu_custom_call.1} parent=1 // pred_check
      _
    $region55: #{tpu_custom_call.1} parent=1 // pred_check_branch
      %1213 = sbr.rel (0) target = $region57
    $region56: #{tpu_custom_call.1} parent=1 // pred_region
      %1215 = vsyncadd [#allocation4], 0
      %s1217 = sshll.u32 [#allocation11], 4
      %s1218 = int_to_ptr.vmem [resolvable:$true] %s1217
      %s1219 = sshll.u32 %s8, 4
      %s1220 = int_to_ptr.hbm [resolvable:$true] %s1219
      %1222 = dma.vmem_to_hbm [thread:$0]  %s1218, 128, %s1220, [#allocation4]
    $region57: #{tpu_custom_call.1} parent=1 // pred_fallthru
      _
    // Predicated region
    $region58: #{tpu_custom_call.1} parent=1 // pred_check
      _
    $region59: #{tpu_custom_call.1} parent=1 // pred_check_branch
      %1224 = sbr.rel (0) target = $region61
    $region60: #{tpu_custom_call.1} parent=1 // pred_region
      %1226 = dma.done [#allocation4], 128
    $region61: #{tpu_custom_call.1} parent=1 // pred_fallthru
      _
    %1227 = vsyncpa [#allocation3], 1
    %1228 = vsyncpa [#allocation6], 1
    %1229 = vsyncpa [#allocation9], 1
    %1230 = vsyncpa [#allocation4], 1

</llo_original>
